<compile_context>
chip_gen: v6e
topology: v6e:2x2x1
jax: 0.10.0
libtpu: 0.0.40
codegen_flags: <defaults>
</compile_context>

<pallas_src>
import functools

import jax
import jax.numpy as jnp
from jax.experimental import pallas as pl
from jax.experimental.pallas import tpu as pltpu


def _net_kernel(x_ref, w1_ref, b1_ref, s_ref, b2_ref, o_ref):
    # x_ref: [tp, pack*I] packed activations (4 samples per row when I=32).
    # Cast to bf16 *inside* the kernel (free VPU op in VMEM; no extra HBM pass).
    x = x_ref[...].astype(jnp.bfloat16)

    # fc1 (+ folded BatchNorm) as a block-diagonal matmul: [tp, 128] @ [128, 128].
    # Each 32-lane group of the output row is one sample's hidden vector.
    h = jnp.dot(x, w1_ref[...], preferred_element_type=jnp.float32)
    h = h + b1_ref[...]                                   # [tp, pack*H] + [1, pack*H]

    # Dropout(p=0.4) is the identity in eval mode.

    # LeakyReLU (torch default negative_slope = 0.01), f32 on the VPU.
    act = jnp.where(h >= 0.0, h, 0.01 * h)

    # fc2 + per-sample segmented reduction as one matmul against the
    # block-diagonal w2 matrix [pack*H, pack]: column j reduces lane-group j.
    # Keeps the 32->1 reduces on the (otherwise idle) MXU instead of the XLU,
    # and yields a [tp, pack] output tile (4x wider stores than [4*tp, 1]).
    logit = jnp.dot(act.astype(jnp.bfloat16), s_ref[...],
                    preferred_element_type=jnp.float32) + b2_ref[0, 0]

    # Sigmoid on the EUP.  approx=False: EUP has plenty of slack and this keeps
    # output probabilities tight (review correctness note).
    # NOTE: padded rows of a partial last tile flow through exp (may be inf on
    # garbage) but are masked on writeback — benign.
    o_ref[...] = pl.reciprocal(1.0 + jnp.exp(-logit), approx=False)


def fold_params(params, *, eps=1e-5, mxu_dtype=jnp.bfloat16):
    """One-time prep: fold eval-mode BatchNorm1d into fc1 and build the
    lane-packed block-diagonal weights (pack = 128 // input_size samples/row)."""
    I, H = params["w1"].shape
    pack = max(1, 128 // I) if I <= 128 else 1

    scale = params["gamma"] * jax.lax.rsqrt(params["running_var"] + eps)      # [1, H]
    w1f = params["w1"] * scale                                                # [I, H]
    b1f = (params["b1"] - params["running_mean"]) * scale + params["beta"]    # [1, H]

    eye = jnp.eye(pack, dtype=jnp.float32)
    w1_bd = jnp.kron(eye, w1f).astype(mxu_dtype)            # [pack*I, pack*H] block-diag
    b1_t = jnp.tile(b1f, (1, pack)).astype(jnp.float32)     # [1, pack*H]
    s_mat = jnp.kron(eye, params["w2"]).astype(mxu_dtype)   # [pack*H, pack]  (fc2+reduce)
    b2 = params["b2"].reshape(1, 1).astype(jnp.float32)     # [1, 1] scalar (SMEM)
    return {"w1_bd": w1_bd, "b1": b1_t, "s": s_mat, "b2": b2}


def _round_up(x, m):
    return -(-x // m) * m


@functools.partial(jax.jit, static_argnames=("tile_b",))
def net_forward(x, folded, *, tile_b=8192):
    """x: [B, input_size] (f32 or bf16, batch-major); folded: fold_params(...).
    Returns [B, 1] f32 probabilities."""
    B, I = x.shape
    L, PH = folded["w1_bd"].shape         # L = pack*I, PH = pack*H
    pack = folded["s"].shape[1]
    if L != pack * I:
        raise ValueError("folded params were built for a different input_size")
    H = PH // pack
    if B % pack:
        # Callers with ragged batches should pad B up to a multiple of `pack`.
        raise ValueError(f"batch {B} must be a multiple of the packing factor {pack}")
    B_pack = B // pack

    # Free contiguous view: each packed row holds `pack` consecutive samples.
    x_packed = x.reshape(B_pack, L)

    # --- tile selection (review items 1 & 2) -------------------------------
    # Big tiles amortize the ~0.35us/step grid overhead; for moderate B force
    # an even, >=2-step grid so dimension_semantics=("parallel",) can shard
    # the batch across both v7x TensorCores.  tp is in packed rows.
    tp_cap = max(8, (min(B_pack, max(1, tile_b // pack)) // 8) * 8)
    if B_pack >= 16:
        tp = min(tp_cap, _round_up(pl.cdiv(B_pack, 2), 8))
    else:
        tp = B_pack                                    # single tile == full dim (allowed)
    grid = (pl.cdiv(B_pack, tp),)

    cost = pl.CostEstimate(
        flops=2 * B * I * H + 4 * B * H,
        transcendentals=B,
        bytes_accessed=int(
            x.size * x.dtype.itemsize
            + folded["w1_bd"].size * folded["w1_bd"].dtype.itemsize
            + folded["s"].size * folded["s"].dtype.itemsize
            + (folded["b1"].size + folded["b2"].size) * 4
            + B * 4),
    )

    out = pl.pallas_call(
        _net_kernel,
        out_shape=jax.ShapeDtypeStruct((B_pack, pack), jnp.float32),
        grid=grid,
        in_specs=[
            pl.BlockSpec((tp, L), lambda i: (i, 0)),     # packed x: batch-tiled, pipelined
            pl.BlockSpec((L, PH), lambda i: (0, 0)),     # block-diag BN-folded w1: VMEM-resident
            pl.BlockSpec((1, PH), lambda i: (0, 0)),     # tiled b1: VMEM-resident
            pl.BlockSpec((PH, pack), lambda i: (0, 0)),  # block-diag w2 reducer: VMEM-resident
            pl.BlockSpec(memory_space=pltpu.SMEM),       # b2 scalar: SMEM
        ],
        out_specs=pl.BlockSpec((tp, pack), lambda i: (i, 0)),
        compiler_params=pltpu.CompilerParams(
            dimension_semantics=("parallel",),           # shards batch across TCs (v7x)
            vmem_limit_bytes=32 * 1024 * 1024,           # ample; do NOT raise (v7x has 64 MiB)
        ),
        cost_estimate=cost,
    )(x_packed, folded["w1_bd"], folded["b1"], folded["s"], folded["b2"])

    return out.reshape(B, 1)                             # free contiguous reshape


def init_params(key, input_size, hidden_size):
    """Deterministic init matching the torch module's parameter shapes (f32 masters)."""
    k1, k2, k3, k4 = jax.random.split(key, 4)
    bound1 = 1.0 / jnp.sqrt(jnp.float32(input_size))
    bound2 = 1.0 / jnp.sqrt(jnp.float32(hidden_size))
    return {
        # fc1: torch weight is [hidden, input]; stored transposed -> [input, hidden]
        "w1": jax.random.uniform(k1, (input_size, hidden_size), jnp.float32,
                                 -bound1, bound1),
        "b1": jax.random.uniform(k2, (1, hidden_size), jnp.float32,
                                 -bound1, bound1),
        # BatchNorm1d(hidden)
        "gamma": jnp.ones((1, hidden_size), jnp.float32),
        "beta": jnp.zeros((1, hidden_size), jnp.float32),
        "running_mean": jnp.zeros((1, hidden_size), jnp.float32),
        "running_var": jnp.ones((1, hidden_size), jnp.float32),
        # fc2: torch weight is [1, hidden]; stored transposed -> [hidden, 1]
        "w2": jax.random.uniform(k3, (hidden_size, 1), jnp.float32,
                                 -bound2, bound2),
        "b2": jax.random.uniform(k4, (1, 1), jnp.float32, -bound2, bound2),
    }


if __name__ == "__main__":
    input_size = 32
    hidden_size = 32
    batch = 2048          # pack=4 -> 512 packed rows -> 2 grid steps (even, for v7x)

    key = jax.random.PRNGKey(0)
    kx, kp = jax.random.split(key)
    x = jax.random.normal(kx, (batch, input_size), dtype=jnp.float32)
    params = init_params(kp, input_size, hidden_size)

    folded = fold_params(params)
    # x stays f32 end-to-end outside the kernel (no separate pre-cast HBM pass);
    # the kernel casts to bf16 in VMEM right before the MXU.
    out = net_forward(x, folded)
    out = jax.block_until_ready(out)

    # Pure-JAX eval-mode reference (unfused, f32) for a tolerance check.
    def reference(x, p, eps=1e-5):
        h = x @ p["w1"] + p["b1"]
        h = (h - p["running_mean"]) * jax.lax.rsqrt(p["running_var"] + eps)
        h = h * p["gamma"] + p["beta"]
        h = jnp.where(h >= 0.0, h, 0.01 * h)
        z = h @ p["w2"] + p["b2"]
        return jax.nn.sigmoid(z)

    ref = reference(x, params)
    assert out.shape == (batch, 1)
    assert bool(jnp.all(jnp.isfinite(out)))
    max_err = float(jnp.max(jnp.abs(out - ref)))
    assert max_err < 2e-2, max_err

    print("KERNEL_OK")
</pallas_src>

<mosaic_0001>
module attributes {stable_mosaic.version = 11 : i64} {
  func.func @_net_kernel(%arg0: i32, %arg1: memref<256x128xf32, #tpu.memory_space<vmem>>, %arg2: memref<128x128xbf16, #tpu.memory_space<vmem>>, %arg3: memref<1x128xf32, #tpu.memory_space<vmem>>, %arg4: memref<128x4xbf16, #tpu.memory_space<vmem>>, %arg5: memref<1x1xf32, #tpu.memory_space<smem>>, %arg6: memref<256x4xf32, #tpu.memory_space<vmem>>) attributes {dimension_semantics = [#tpu.dimension_semantics<parallel>], iteration_bounds = array<i64: 2>, scalar_prefetch = 0 : i64, scratch_operands = 0 : i64, tpu.core_type = #tpu.core_type<tc>, window_params = [{transform_indices = @transform_0, window_bounds = array<i64: 256, 128>}, {pipeline_mode = #tpu.pipeline_mode<synchronous>, transform_indices = @transform_1, window_bounds = array<i64: 128, 128>}, {pipeline_mode = #tpu.pipeline_mode<synchronous>, transform_indices = @transform_2, window_bounds = array<i64: 1, 128>}, {pipeline_mode = #tpu.pipeline_mode<synchronous>, transform_indices = @transform_3, window_bounds = array<i64: 128, 4>}, {transform_indices = @transform_4, window_bounds = array<i64: 1, 1>}, {transform_indices = @transform_5, window_bounds = array<i64: 256, 4>}]} {
    %c0 = arith.constant 0 : index
    %c0_0 = arith.constant 0 : index
    %0 = vector.load %arg1[%c0, %c0_0] : memref<256x128xf32, #tpu.memory_space<vmem>>, vector<256x128xf32>
    %1 = arith.truncf %0 : vector<256x128xf32> to vector<256x128xbf16>
    %c0_1 = arith.constant 0 : index
    %c0_2 = arith.constant 0 : index
    %2 = vector.load %arg2[%c0_1, %c0_2] : memref<128x128xbf16, #tpu.memory_space<vmem>>, vector<128x128xbf16>
    %cst = arith.constant dense<0.000000e+00> : vector<256x128xf32>
    %3 = tpu.matmul %1, %2, %cst {dimension_numbers = #tpu.dot_dimension_numbers<[1], [0], [0], [1], [0, 0, 1, 1], [], []>} : vector<256x128xbf16>, vector<128x128xbf16>, vector<256x128xf32> -> vector<256x128xf32>
    %c0_3 = arith.constant 0 : index
    %c0_4 = arith.constant 0 : index
    %4 = vector.load %arg3[%c0_3, %c0_4] : memref<1x128xf32, #tpu.memory_space<vmem>>, vector<1x128xf32>
    %5 = vector.broadcast %4 : vector<1x128xf32> to vector<256x128xf32>
    %6 = arith.addf %3, %5 : vector<256x128xf32>
    %cst_5 = arith.constant 0.000000e+00 : f32
    %7 = vector.broadcast %cst_5 : f32 to vector<256x128xf32>
    %8 = arith.cmpf oge, %6, %7 : vector<256x128xf32>
    %cst_6 = arith.constant 0.00999999977 : f32
    %9 = vector.broadcast %cst_6 : f32 to vector<256x128xf32>
    %10 = arith.mulf %9, %6 : vector<256x128xf32>
    %11 = arith.select %8, %6, %10 : vector<256x128xi1>, vector<256x128xf32>
    %12 = arith.truncf %11 : vector<256x128xf32> to vector<256x128xbf16>
    %c0_7 = arith.constant 0 : index
    %c0_8 = arith.constant 0 : index
    %13 = vector.load %arg4[%c0_7, %c0_8] : memref<128x4xbf16, #tpu.memory_space<vmem>>, vector<128x4xbf16>
    %cst_9 = arith.constant dense<0.000000e+00> : vector<256x4xf32>
    %14 = tpu.matmul %12, %13, %cst_9 {dimension_numbers = #tpu.dot_dimension_numbers<[1], [0], [0], [1], [0, 0, 1, 1], [], []>} : vector<256x128xbf16>, vector<128x4xbf16>, vector<256x4xf32> -> vector<256x4xf32>
    %c0_10 = arith.constant 0 : index
    %c0_11 = arith.constant 0 : index
    %15 = memref.load %arg5[%c0_10, %c0_11] : memref<1x1xf32, #tpu.memory_space<smem>>
    %16 = vector.broadcast %15 : f32 to vector<256x4xf32>
    %17 = arith.addf %14, %16 : vector<256x4xf32>
    %cst_12 = arith.constant 0.000000e+00 : f32
    %18 = vector.broadcast %cst_12 : f32 to vector<256x4xf32>
    %19 = arith.subf %18, %17 : vector<256x4xf32>
    %20 = math.exp %19 : vector<256x4xf32>
    %cst_13 = arith.constant 1.000000e+00 : f32
    %21 = vector.broadcast %cst_13 : f32 to vector<256x4xf32>
    %22 = arith.addf %21, %20 : vector<256x4xf32>
    %23 = tpu.reciprocal %22 : vector<256x4xf32> -> vector<256x4xf32>
    %c0_14 = arith.constant 0 : index
    %c0_15 = arith.constant 0 : index
    %24 = vector.load %arg6[%c0_14, %c0_15] : memref<256x4xf32, #tpu.memory_space<vmem>>, vector<256x4xf32>
    tpu.vector_store %arg6[%c0_14, %c0_15], %23 {strides = array<i32>} : memref<256x4xf32, #tpu.memory_space<vmem>>, vector<256x4xf32>,
    return
  }
  func.func @transform_0(%arg0: i32) -> (i32, i32) {
    %c0_i32 = arith.constant 0 : i32
    %c0_i32_0 = arith.constant 0 : i32
    return %arg0, %c0_i32 : i32, i32
  }
  func.func @transform_1(%arg0: i32) -> (i32, i32) {
    %c0_i32 = arith.constant 0 : i32
    %c0_i32_0 = arith.constant 0 : i32
    %c0_i32_1 = arith.constant 0 : i32
    return %c0_i32, %c0_i32_0 : i32, i32
  }
  func.func @transform_2(%arg0: i32) -> (i32, i32) {
    %c0_i32 = arith.constant 0 : i32
    %c0_i32_0 = arith.constant 0 : i32
    %c0_i32_1 = arith.constant 0 : i32
    return %c0_i32, %c0_i32_0 : i32, i32
  }
  func.func @transform_3(%arg0: i32) -> (i32, i32) {
    %c0_i32 = arith.constant 0 : i32
    %c0_i32_0 = arith.constant 0 : i32
    %c0_i32_1 = arith.constant 0 : i32
    return %c0_i32, %c0_i32_0 : i32, i32
  }
  func.func @transform_4(%arg0: i32) -> (i32, i32) {
    %c0_i32 = arith.constant 0 : i32
    %c0_i32_0 = arith.constant 0 : i32
    %c0_i32_1 = arith.constant 0 : i32
    return %c0_i32, %c0_i32_0 : i32, i32
  }
  func.func @transform_5(%arg0: i32) -> (i32, i32) {
    %c0_i32 = arith.constant 0 : i32
    %c0_i32_0 = arith.constant 0 : i32
    return %arg0, %c0_i32 : i32, i32
  }
}

</mosaic_0001>

<llo_original>
// kernel: net_forward.1
$region0: #{net_forward.1}
  #allocation0 [shape = 'u32[]', space=smem, size = 0x4, offset = 0x4, fixed_abs, tag = 'smem constant byte address 0x4 - core index']
  #allocation1 [shape = 'u32[144,128]{1,0:T(1,128)}', space=vmem, size = 0x12000, scoped, tag = 'internal scratch']
  #allocation2 [shape = 'f32[1,1]{1,0:T(1,128)S(6)}', space=smem, size = 0x200, scoped, tag = 'scoped memory for net_forward.1']
  %s0 = inlined_call_operand.vmem [shape: f32[512,128], index: 0, kind: input, shape index: {}]
  %s1 = inlined_call_operand.vmem [shape: bf16[128,128], index: 1, kind: input, shape index: {}]
  %s2 = inlined_call_operand.vmem [shape: f32[1,128], index: 2, kind: input, shape index: {}]
  %s3 = inlined_call_operand.vmem [shape: bf16[128,4], index: 3, kind: input, shape index: {}]
  %s4 = inlined_call_operand.<no memory space> [shape: f32[1,1], index: 4, kind: input, shape index: {}]
  %s5 = inlined_call_operand.vmem [shape: f32[512,4], index: 5, kind: output, shape index: {}]
  %s6 = sld [smem:[#allocation0]]
  $region53: #{net_forward.1} parent=0
    _
  %s8 = ssub.s32 1, %s6
  %s9 = scalar_select 0, %s8, %s6
  %10 = sst [smem:[#allocation2]] %s4
  loop: start=0, step=1, limit=4
  $region2: #{net_forward.1} parent=0 // loop_pre_header
    _
  $region3: #{net_forward.1} parent=0 // loop_header
    %s12 = sphi 0, %s16
    %p13 = scmp.ge.s32.totalorder %s12, 4
    %s22 = sphi 0, %s24
    %s25 = sphi 0, %s22
    %s26 = sphi 0, %s25
    %s42 = sphi 0, %s26
    %s46 = sphi 0, %s46
    %s48 = sphi 0, %s46
    %s49 = sphi 0, %s48
    %s63 = sphi 0, %s49
    %s67 = sphi 0, %s67
    %s69 = sphi 0, %s67
    %s70 = sphi 0, %s69
    %s84 = sphi 0, %s70
    %s88 = sphi 0, %s88
    %s90 = sphi 0, %s88
    %s91 = sphi 0, %s90
    %s105 = sphi 0, %s91
    %s109 = sphi 0, %s109
    %s111 = sphi 0, %s109
    %s112 = sphi 0, %s111
    %s126 = sphi 0, %s112
    %s132 = sphi 0, %s134
    %s135 = sphi 0, %s132
    %s136 = sphi 0, %s135
    %s152 = sphi 0, %s136
  $region4: #{net_forward.1} parent=0 // loop_header_branch
    %15 = sbr.rel (%p13) target = $region8
  $region5: #{net_forward.1} parent=0 // loop_body
    %s17 = ssub.s32 %s12, 1
    %s18 = ssub.s32 %s12, 2
    %s19 = sadd.s32 %s12, 1
    %s20 = ssub.s32 %s12, %s19
    %p21 = scmp.eq.s32.totalorder %s20, 0
    %s23 = sadd.s32 %s22, 1
    %s24 = scalar_select %p21, %s22, %s23
    %p27 = pneg %p21
    %p28 = scmp.eq.s32.totalorder %s12, 1
    %p29 = por %p27, %p28
    %p30 = scmp.ne.s32.totalorder %s22, %s25
    %p31 = scmp.eq.s32.totalorder %s12, 0
    %p32 = por %p30, %p31
    %p33 = scmp.ne.s32.totalorder %s22, %s25
    %p34 = scmp.eq.s32.totalorder %s17, 1
    %p35 = por %p33, %p34
    %p36 = scmp.ne.s32.totalorder %s25, %s26
    %p37 = scmp.eq.s32.totalorder %s17, 0
    %p38 = por %p36, %p37
    %p39 = scmp.ne.s32.totalorder %s25, %s26
    %p40 = scmp.eq.s32.totalorder %s18, 1
    %p41 = por %p39, %p40
    %p43 = scmp.ne.s32.totalorder %s26, %s42
    %p44 = scmp.eq.s32.totalorder %s18, 0
    %p45 = por %p43, %p44
    %s47 = sadd.s32 %s46, 1
    %p50 = scmp.eq.s32.totalorder %s12, 1
    %p51 = scmp.ne.s32.totalorder %s46, %s48
    %p52 = scmp.eq.s32.totalorder %s12, 0
    %p53 = por %p51, %p52
    %p54 = scmp.ne.s32.totalorder %s46, %s48
    %p55 = scmp.eq.s32.totalorder %s17, 1
    %p56 = por %p54, %p55
    %p57 = scmp.ne.s32.totalorder %s48, %s49
    %p58 = scmp.eq.s32.totalorder %s17, 0
    %p59 = por %p57, %p58
    %p60 = scmp.ne.s32.totalorder %s48, %s49
    %p61 = scmp.eq.s32.totalorder %s18, 1
    %p62 = por %p60, %p61
    %p64 = scmp.ne.s32.totalorder %s49, %s63
    %p65 = scmp.eq.s32.totalorder %s18, 0
    %p66 = por %p64, %p65
    %s68 = sadd.s32 %s67, 1
    %p71 = scmp.eq.s32.totalorder %s12, 1
    %p72 = scmp.ne.s32.totalorder %s67, %s69
    %p73 = scmp.eq.s32.totalorder %s12, 0
    %p74 = por %p72, %p73
    %p75 = scmp.ne.s32.totalorder %s67, %s69
    %p76 = scmp.eq.s32.totalorder %s17, 1
    %p77 = por %p75, %p76
    %p78 = scmp.ne.s32.totalorder %s69, %s70
    %p79 = scmp.eq.s32.totalorder %s17, 0
    %p80 = por %p78, %p79
    %p81 = scmp.ne.s32.totalorder %s69, %s70
    %p82 = scmp.eq.s32.totalorder %s18, 1
    %p83 = por %p81, %p82
    %p85 = scmp.ne.s32.totalorder %s70, %s84
    %p86 = scmp.eq.s32.totalorder %s18, 0
    %p87 = por %p85, %p86
    %s89 = sadd.s32 %s88, 1
    %p92 = scmp.eq.s32.totalorder %s12, 1
    %p93 = scmp.ne.s32.totalorder %s88, %s90
    %p94 = scmp.eq.s32.totalorder %s12, 0
    %p95 = por %p93, %p94
    %p96 = scmp.ne.s32.totalorder %s88, %s90
    %p97 = scmp.eq.s32.totalorder %s17, 1
    %p98 = por %p96, %p97
    %p99 = scmp.ne.s32.totalorder %s90, %s91
    %p100 = scmp.eq.s32.totalorder %s17, 0
    %p101 = por %p99, %p100
    %p102 = scmp.ne.s32.totalorder %s90, %s91
    %p103 = scmp.eq.s32.totalorder %s18, 1
    %p104 = por %p102, %p103
    %p106 = scmp.ne.s32.totalorder %s91, %s105
    %p107 = scmp.eq.s32.totalorder %s18, 0
    %p108 = por %p106, %p107
    %s110 = sadd.s32 %s109, 1
    %p113 = scmp.eq.s32.totalorder %s12, 1
    %p114 = scmp.ne.s32.totalorder %s109, %s111
    %p115 = scmp.eq.s32.totalorder %s12, 0
    %p116 = por %p114, %p115
    %p117 = scmp.ne.s32.totalorder %s109, %s111
    %p118 = scmp.eq.s32.totalorder %s17, 1
    %p119 = por %p117, %p118
    %p120 = scmp.ne.s32.totalorder %s111, %s112
    %p121 = scmp.eq.s32.totalorder %s17, 0
    %p122 = por %p120, %p121
    %p123 = scmp.ne.s32.totalorder %s111, %s112
    %p124 = scmp.eq.s32.totalorder %s18, 1
    %p125 = por %p123, %p124
    %p127 = scmp.ne.s32.totalorder %s112, %s126
    %p128 = scmp.eq.s32.totalorder %s18, 0
    %p129 = por %p127, %p128
    %s130 = ssub.s32 %s12, %s19
    %p131 = scmp.eq.s32.totalorder %s130, 0
    %s133 = sadd.s32 %s132, 1
    %s134 = scalar_select %p131, %s132, %s133
    %p137 = pneg %p131
    %p138 = scmp.eq.s32.totalorder %s12, 1
    %p139 = por %p137, %p138
    %p140 = scmp.ne.s32.totalorder %s132, %s135
    %p141 = scmp.eq.s32.totalorder %s12, 0
    %p142 = por %p140, %p141
    %p143 = scmp.ne.s32.totalorder %s132, %s135
    %p144 = scmp.eq.s32.totalorder %s17, 1
    %p145 = por %p143, %p144
    %p146 = scmp.ne.s32.totalorder %s135, %s136
    %p147 = scmp.eq.s32.totalorder %s17, 0
    %p148 = por %p146, %p147
    %p149 = scmp.ne.s32.totalorder %s135, %s136
    %p150 = scmp.eq.s32.totalorder %s18, 1
    %p151 = por %p149, %p150
    %p153 = scmp.ne.s32.totalorder %s136, %s152
    %p154 = scmp.eq.s32.totalorder %s18, 0
    %p155 = por %p153, %p154
    %p156 = scmp.le.s32.totalorder 1, %s12
    %p157 = scmp.lt.s32.totalorder %s12, 3
    %p158 = pnand %p156, %p157
    %p159 = pneg %p158
    // Predicated region
    $region9: #{net_forward.1} parent=5 // pred_check
      _
    $region10: #{net_forward.1} parent=5 // pred_check_branch
      %161 = sbr.rel (%p158) target = $region12
    $region11: #{net_forward.1} parent=5 // pred_region
      %s162 = ssub.s32 %s12, 1
      // Predicated region
      $region13: #{net_forward.1} parent=11 // pred_check
        %p163 = pneg %p59
      $region14: #{net_forward.1} parent=11 // pred_check_branch
        %165 = sbr.rel (%p163) target = $region16
      $region15: #{net_forward.1} parent=11 // pred_region
        _
      $region16: #{net_forward.1} parent=11 // pred_fallthru
        _
      // Predicated region
      $region17: #{net_forward.1} parent=11 // pred_check
        %p166 = pneg %p80
      $region18: #{net_forward.1} parent=11 // pred_check_branch
        %168 = sbr.rel (%p166) target = $region20
      $region19: #{net_forward.1} parent=11 // pred_region
        _
      $region20: #{net_forward.1} parent=11 // pred_fallthru
        _
      // Predicated region
      $region21: #{net_forward.1} parent=11 // pred_check
        %p169 = pneg %p101
      $region22: #{net_forward.1} parent=11 // pred_check_branch
        %171 = sbr.rel (%p169) target = $region24
      $region23: #{net_forward.1} parent=11 // pred_region
        _
      $region24: #{net_forward.1} parent=11 // pred_fallthru
        _
      // Predicated region
      $region25: #{net_forward.1} parent=11 // pred_check
        %p172 = pneg %p122
      $region26: #{net_forward.1} parent=11 // pred_check_branch
        %174 = sbr.rel (%p172) target = $region28
      $region27: #{net_forward.1} parent=11 // pred_region
        _
      $region28: #{net_forward.1} parent=11 // pred_fallthru
        _
    $region12: #{net_forward.1} parent=5 // pred_fallthru
      _
    %p175 = scmp.lt.s32.totalorder %s12, 2
    // Predicated region
    $region29: #{net_forward.1} parent=5 // pred_check
      %p176 = pneg %p175
    $region30: #{net_forward.1} parent=5 // pred_check_branch
      %178 = sbr.rel (%p176) target = $region32
    $region31: #{net_forward.1} parent=5 // pred_region
      // Predicated region
      $region33: #{net_forward.1} parent=31 // pred_check
        %p179 = pneg %p32
      $region34: #{net_forward.1} parent=31 // pred_check_branch
        %181 = sbr.rel (%p179) target = $region36
      $region35: #{net_forward.1} parent=31 // pred_region
        %s182 = smul.u32 32, %s12
        %p183 = scmp.lt.s32.totalorder %s182, 63
        %s184 = scalar_select %p183, %s182, 63
        %s185 = smul.addr %s184, 8
        %s186 = scalar_lea.vmem %s0, %s185
        %s187 = smul.u32 32, %s12
      $region36: #{net_forward.1} parent=31 // pred_fallthru
        _
    $region32: #{net_forward.1} parent=5 // pred_fallthru
      _
    %p188 = scmp.le.s32.totalorder 1, %s12
    %p189 = scmp.lt.s32.totalorder %s12, 3
    %p190 = pnand %p188, %p189
    %p191 = pneg %p190
    // Predicated region
    $region37: #{net_forward.1} parent=5 // pred_check
      _
    $region38: #{net_forward.1} parent=5 // pred_check_branch
      %193 = sbr.rel (%p190) target = $region40
    $region39: #{net_forward.1} parent=5 // pred_region
      %s194 = ssub.s32 %s12, 1
      %s195 = smul.u32 32, %s17
      %p196 = scmp.lt.s32.totalorder %s195, 63
      %s197 = scalar_select %p196, %s195, 63
      %s198 = smul.addr %s197, 8
      %s199 = scalar_lea.vmem %s0, %s198
      %p200 = pneg %p38
      %p201 = pneg %p35
      %p202 = pneg %p59
      %p203 = pneg %p56
      %p204 = pneg %p80
      %p205 = pneg %p77
      %p206 = pneg %p101
      %p207 = pneg %p98
      %p208 = pneg %p122
      %p209 = pneg %p119
      %p210 = pneg %p148
      %p211 = pneg %p145
      %s212 = smul.u32 32, %s17
      %p213 = scmp.lt.s32.totalorder %s212, 63
      %s214 = scalar_select %p213, %s212, 63
      %s215 = smul.addr %s214, 8
      %s216 = scalar_lea.vmem %s5, %s215
      %s217 = smul.u32 32, %s17
      %p218 = scmp.lt.s32.totalorder %s217, 63
      %s219 = scalar_select %p218, %s217, 63
      %s220 = smul.addr %s219, 8
      %s221 = scalar_lea.vmem %s0, %s220
      %s222 = smul.u32 32, %s17
      %s223 = smul.u32 32, %s17
      %p224 = scmp.lt.s32.totalorder %s223, 63
      %s225 = scalar_select %p224, %s223, 63
      %s226 = smul.addr %s225, 8
      %s227 = scalar_lea.vmem %s5, %s226
      %s228 = smul.u32 32, %s17
      %v230 = vld [vmem:[%s221] sm:$0xff]
      %v231 = vld [vmem:[%s221 + $0x8] sm:$0xff]
      %v232 = vld [vmem:[%s221 + $0x10] sm:$0xff]
      %v233 = vld [vmem:[%s221 + $0x18] sm:$0xff]
      %v234 = vld [vmem:[%s221 + $0x20] sm:$0xff]
      %v235 = vld [vmem:[%s221 + $0x28] sm:$0xff]
      %v236 = vld [vmem:[%s221 + $0x30] sm:$0xff]
      %v237 = vld [vmem:[%s221 + $0x38] sm:$0xff]
      %v238 = vld [vmem:[%s221 + $0x40] sm:$0xff]
      %v239 = vld [vmem:[%s221 + $0x48] sm:$0xff]
      %v240 = vld [vmem:[%s221 + $0x50] sm:$0xff]
      %v241 = vld [vmem:[%s221 + $0x58] sm:$0xff]
      %v242 = vld [vmem:[%s221 + $0x60] sm:$0xff]
      %v243 = vld [vmem:[%s221 + $0x68] sm:$0xff]
      %v244 = vld [vmem:[%s221 + $0x70] sm:$0xff]
      %v245 = vld [vmem:[%s221 + $0x78] sm:$0xff]
      %v246 = vld [vmem:[%s221 + $0x80] sm:$0xff]
      %v247 = vld [vmem:[%s221 + $0x88] sm:$0xff]
      %v248 = vld [vmem:[%s221 + $0x90] sm:$0xff]
      %v249 = vld [vmem:[%s221 + $0x98] sm:$0xff]
      %v250 = vld [vmem:[%s221 + $0xa0] sm:$0xff]
      %v251 = vld [vmem:[%s221 + $0xa8] sm:$0xff]
      %v252 = vld [vmem:[%s221 + $0xb0] sm:$0xff]
      %v253 = vld [vmem:[%s221 + $0xb8] sm:$0xff]
      %v254 = vld [vmem:[%s221 + $0xc0] sm:$0xff]
      %v255 = vld [vmem:[%s221 + $0xc8] sm:$0xff]
      %v256 = vld [vmem:[%s221 + $0xd0] sm:$0xff]
      %v257 = vld [vmem:[%s221 + $0xd8] sm:$0xff]
      %v258 = vld [vmem:[%s221 + $0xe0] sm:$0xff]
      %v259 = vld [vmem:[%s221 + $0xe8] sm:$0xff]
      %v260 = vld [vmem:[%s221 + $0xf0] sm:$0xff]
      %v261 = vld [vmem:[%s221 + $0xf8] sm:$0xff]
      %v262 = vpack.c.bf16 %v231, %v230
      %v263 = vpack.c.bf16 %v233, %v232
      %v264 = vpack.c.bf16 %v235, %v234
      %v265 = vpack.c.bf16 %v237, %v236
      %v266 = vpack.c.bf16 %v239, %v238
      %v267 = vpack.c.bf16 %v241, %v240
      %v268 = vpack.c.bf16 %v243, %v242
      %v269 = vpack.c.bf16 %v245, %v244
      %v270 = vpack.c.bf16 %v247, %v246
      %v271 = vpack.c.bf16 %v249, %v248
      %v272 = vpack.c.bf16 %v251, %v250
      %v273 = vpack.c.bf16 %v253, %v252
      %v274 = vpack.c.bf16 %v255, %v254
      %v275 = vpack.c.bf16 %v257, %v256
      %v276 = vpack.c.bf16 %v259, %v258
      %v277 = vpack.c.bf16 %v261, %v260
      %v278 = vld [vmem:[%s1] sm:$0xf]
      %v279 = vld [vmem:[%s1 + $0x4] sm:$0xf]
      %v280 = vld [vmem:[%s1 + $0x8] sm:$0xf]
      %v281 = vld [vmem:[%s1 + $0xc] sm:$0xf]
      %v282 = vld [vmem:[%s1 + $0x10] sm:$0xf]
      %v283 = vld [vmem:[%s1 + $0x14] sm:$0xf]
      %v284 = vld [vmem:[%s1 + $0x18] sm:$0xf]
      %v285 = vld [vmem:[%s1 + $0x1c] sm:$0xf]
      %v286 = vld [vmem:[%s1 + $0x20] sm:$0xf]
      %v287 = vld [vmem:[%s1 + $0x24] sm:$0xf]
      %v288 = vld [vmem:[%s1 + $0x28] sm:$0xf]
      %v289 = vld [vmem:[%s1 + $0x2c] sm:$0xf]
      %v290 = vld [vmem:[%s1 + $0x30] sm:$0xf]
      %v291 = vld [vmem:[%s1 + $0x34] sm:$0xf]
      %v292 = vld [vmem:[%s1 + $0x38] sm:$0xf]
      %v293 = vld [vmem:[%s1 + $0x3c] sm:$0xf]
      %v294 = vld [vmem:[%s2] sm:$0x1]
      %v296 = vlaneseq
      %v297 = vshrl.u32 %v296, 7
      %v298 = vsub.s32 0, %v297
      %v299 = vrot.slane %v294, %v298
      %v317 = vunpack.c.l.b16 %v278
      %v318 = vunpack.c.l.b16 %v279
      %v319 = vunpack.c.l.b16 %v280
      %v320 = vunpack.c.l.b16 %v281
      %v321 = vunpack.c.l.b16 %v282
      %v322 = vunpack.c.l.b16 %v283
      %v323 = vunpack.c.l.b16 %v284
      %v324 = vunpack.c.l.b16 %v285
      %v325 = vunpack.c.l.b16 %v286
      %v326 = vunpack.c.l.b16 %v287
      %v327 = vunpack.c.l.b16 %v288
      %v328 = vunpack.c.l.b16 %v289
      %v329 = vunpack.c.l.b16 %v290
      %v330 = vunpack.c.l.b16 %v291
      %v331 = vunpack.c.l.b16 %v292
      %v332 = vunpack.c.l.b16 %v293
      %v333 = vpack.c.b16 %v318, %v317
      %v334 = vpack.c.b16 %v320, %v319
      %v335 = vpack.c.b16 %v322, %v321
      %v336 = vpack.c.b16 %v324, %v323
      %v337 = vpack.c.b16 %v326, %v325
      %v338 = vpack.c.b16 %v328, %v327
      %v339 = vpack.c.b16 %v330, %v329
      %v340 = vpack.c.b16 %v332, %v331
      %349 = vmatprep.subr.bf16.mxu0 0
      %350 = vmatpush1.bf16.msra.mxu0 %v340
      %351 = vmatprep.subr.bf16.mxu0 0
      %352 = vmatpush1.bf16.msra.mxu0 %v339
      %353 = vmatprep.subr.bf16.mxu0 0
      %354 = vmatpush1.bf16.msra.mxu0 %v338
      %355 = vmatprep.subr.bf16.mxu0 0
      %356 = vmatpush1.bf16.msra.mxu0 %v337
      %357 = vmatprep.subr.bf16.mxu0 0
      %358 = vmatpush1.bf16.msra.mxu0 %v336
      %359 = vmatprep.subr.bf16.mxu0 0
      %360 = vmatpush1.bf16.msra.mxu0 %v335
      %361 = vmatprep.subr.bf16.mxu0 0
      %362 = vmatpush1.bf16.msra.mxu0 %v334
      %363 = vmatprep.subr.bf16.mxu0 0
      %364 = vmatpush1.bf16.msra.mxu0 %v333
      %365 = vmatprep.subr.bf16.mxu0 0
      %366 = vmatpush2.bf16.msra.mxu0 0
      %367 = vmatprep.subr.bf16.mxu0 0
      %368 = vmatpush2.bf16.msra.mxu0 0
      %369 = vmatprep.subr.bf16.mxu0 0
      %370 = vmatpush2.bf16.msra.mxu0 0
      %371 = vmatprep.subr.bf16.mxu0 0
      %372 = vmatpush2.bf16.msra.mxu0 0
      %373 = vmatprep.subr.bf16.mxu0 0
      %374 = vmatpush2.bf16.msra.mxu0 0
      %375 = vmatprep.subr.bf16.mxu0 0
      %376 = vmatpush2.bf16.msra.mxu0 0
      %377 = vmatprep.subr.bf16.mxu0 0
      %378 = vmatpush2.bf16.msra.mxu0 0
      %379 = vmatprep.subr.bf16.mxu0 0
      %380 = vmatpush2.bf16.msra.mxu0 0
      %381 = vmatprep.mubr.bf16.mxu0 0
      %382 = vmatmul.mubr.bf16.gmra.mxu0 %v262
      %v383 = vpop.f32.mrf.mxu0
      %v384 = vadd.f32 %v299, %v383
      %v385 = vpop.f32.mrf.mxu0
      %v386 = vpop.f32.mrf.mxu0
      %v387 = vadd.f32 %v299, %v386
      %v388 = vpop.f32.mrf.mxu0
      %389 = vmatprep.mubr.bf16.mxu0 0
      %390 = vmatmul.mubr.bf16.gmra.mxu0 %v263
      %v391 = vpop.f32.mrf.mxu0
      %v392 = vadd.f32 %v299, %v391
      %v393 = vpop.f32.mrf.mxu0
      %v394 = vpop.f32.mrf.mxu0
      %v395 = vadd.f32 %v299, %v394
      %v396 = vpop.f32.mrf.mxu0
      %397 = vmatprep.mubr.bf16.mxu0 0
      %398 = vmatmul.mubr.bf16.gmra.mxu0 %v264
      %v399 = vpop.f32.mrf.mxu0
      %v400 = vadd.f32 %v299, %v399
      %v401 = vpop.f32.mrf.mxu0
      %v402 = vpop.f32.mrf.mxu0
      %v403 = vadd.f32 %v299, %v402
      %v404 = vpop.f32.mrf.mxu0
      %405 = vmatprep.mubr.bf16.mxu0 0
      %406 = vmatmul.mubr.bf16.gmra.mxu0 %v265
      %v407 = vpop.f32.mrf.mxu0
      %v408 = vadd.f32 %v299, %v407
      %v409 = vpop.f32.mrf.mxu0
      %v410 = vpop.f32.mrf.mxu0
      %v411 = vadd.f32 %v299, %v410
      %v412 = vpop.f32.mrf.mxu0
      %413 = vmatprep.mubr.bf16.mxu0 0
      %414 = vmatmul.mubr.bf16.gmra.mxu0 %v266
      %v415 = vpop.f32.mrf.mxu0
      %v416 = vadd.f32 %v299, %v415
      %v417 = vpop.f32.mrf.mxu0
      %v418 = vpop.f32.mrf.mxu0
      %v419 = vadd.f32 %v299, %v418
      %v420 = vpop.f32.mrf.mxu0
      %421 = vmatprep.mubr.bf16.mxu0 0
      %422 = vmatmul.mubr.bf16.gmra.mxu0 %v267
      %v423 = vpop.f32.mrf.mxu0
      %v424 = vadd.f32 %v299, %v423
      %v425 = vpop.f32.mrf.mxu0
      %v426 = vpop.f32.mrf.mxu0
      %v427 = vadd.f32 %v299, %v426
      %v428 = vpop.f32.mrf.mxu0
      %429 = vmatprep.mubr.bf16.mxu0 0
      %430 = vmatmul.mubr.bf16.gmra.mxu0 %v268
      %v431 = vpop.f32.mrf.mxu0
      %v432 = vadd.f32 %v299, %v431
      %v433 = vpop.f32.mrf.mxu0
      %v434 = vpop.f32.mrf.mxu0
      %v435 = vadd.f32 %v299, %v434
      %v436 = vpop.f32.mrf.mxu0
      %437 = vmatprep.mubr.bf16.mxu0 0
      %438 = vmatmul.mubr.bf16.gmra.mxu0 %v269
      %v439 = vpop.f32.mrf.mxu0
      %v440 = vadd.f32 %v299, %v439
      %v441 = vpop.f32.mrf.mxu0
      %v442 = vpop.f32.mrf.mxu0
      %v443 = vadd.f32 %v299, %v442
      %v444 = vpop.f32.mrf.mxu0
      %445 = vmatprep.mubr.bf16.mxu0 0
      %446 = vmatmul.mubr.bf16.gmra.mxu0 %v270
      %v447 = vpop.f32.mrf.mxu0
      %v448 = vadd.f32 %v299, %v447
      %v449 = vpop.f32.mrf.mxu0
      %v450 = vpop.f32.mrf.mxu0
      %v451 = vadd.f32 %v299, %v450
      %v452 = vpop.f32.mrf.mxu0
      %453 = vmatprep.mubr.bf16.mxu0 0
      %454 = vmatmul.mubr.bf16.gmra.mxu0 %v271
      %v455 = vpop.f32.mrf.mxu0
      %v456 = vadd.f32 %v299, %v455
      %v457 = vpop.f32.mrf.mxu0
      %v458 = vpop.f32.mrf.mxu0
      %v459 = vadd.f32 %v299, %v458
      %v460 = vpop.f32.mrf.mxu0
      %461 = vmatprep.mubr.bf16.mxu0 0
      %462 = vmatmul.mubr.bf16.gmra.mxu0 %v272
      %v463 = vpop.f32.mrf.mxu0
      %v464 = vadd.f32 %v299, %v463
      %v465 = vpop.f32.mrf.mxu0
      %v466 = vpop.f32.mrf.mxu0
      %v467 = vadd.f32 %v299, %v466
      %v468 = vpop.f32.mrf.mxu0
      %469 = vmatprep.mubr.bf16.mxu0 0
      %470 = vmatmul.mubr.bf16.gmra.mxu0 %v273
      %v471 = vpop.f32.mrf.mxu0
      %v472 = vadd.f32 %v299, %v471
      %v473 = vpop.f32.mrf.mxu0
      %v474 = vpop.f32.mrf.mxu0
      %v475 = vadd.f32 %v299, %v474
      %v476 = vpop.f32.mrf.mxu0
      %477 = vmatprep.mubr.bf16.mxu0 0
      %478 = vmatmul.mubr.bf16.gmra.mxu0 %v274
      %v479 = vpop.f32.mrf.mxu0
      %v480 = vadd.f32 %v299, %v479
      %v481 = vpop.f32.mrf.mxu0
      %v482 = vpop.f32.mrf.mxu0
      %v483 = vadd.f32 %v299, %v482
      %v484 = vpop.f32.mrf.mxu0
      %485 = vmatprep.mubr.bf16.mxu0 0
      %486 = vmatmul.mubr.bf16.gmra.mxu0 %v275
      %v487 = vpop.f32.mrf.mxu0
      %v488 = vadd.f32 %v299, %v487
      %v489 = vpop.f32.mrf.mxu0
      %v490 = vpop.f32.mrf.mxu0
      %v491 = vadd.f32 %v299, %v490
      %v492 = vpop.f32.mrf.mxu0
      %493 = vmatprep.mubr.bf16.mxu0 0
      %494 = vmatmul.mubr.bf16.gmra.mxu0 %v276
      %v495 = vpop.f32.mrf.mxu0
      %v496 = vadd.f32 %v299, %v495
      %v497 = vpop.f32.mrf.mxu0
      %v498 = vpop.f32.mrf.mxu0
      %v499 = vadd.f32 %v299, %v498
      %v500 = vpop.f32.mrf.mxu0
      %501 = vmatprep.mubr.bf16.mxu0 0
      %502 = vmatmul.mubr.bf16.gmra.mxu0 %v277
      %v503 = vpop.f32.mrf.mxu0
      %v504 = vadd.f32 %v299, %v503
      %v505 = vpop.f32.mrf.mxu0
      %v506 = vpop.f32.mrf.mxu0
      %v507 = vadd.f32 %v299, %v506
      %v508 = vpop.f32.mrf.mxu0
      %509 = vdwg.mxu0
      %vm510 = vcmp.ge.f32.partialorder %v384, 0.0
      %vm511 = vcmp.ge.f32.partialorder %v387, 0.0
      %vm512 = vcmp.ge.f32.partialorder %v392, 0.0
      %vm513 = vcmp.ge.f32.partialorder %v395, 0.0
      %vm514 = vcmp.ge.f32.partialorder %v400, 0.0
      %vm515 = vcmp.ge.f32.partialorder %v403, 0.0
      %vm516 = vcmp.ge.f32.partialorder %v408, 0.0
      %vm517 = vcmp.ge.f32.partialorder %v411, 0.0
      %vm518 = vcmp.ge.f32.partialorder %v416, 0.0
      %vm519 = vcmp.ge.f32.partialorder %v419, 0.0
      %vm520 = vcmp.ge.f32.partialorder %v424, 0.0
      %vm521 = vcmp.ge.f32.partialorder %v427, 0.0
      %vm522 = vcmp.ge.f32.partialorder %v432, 0.0
      %vm523 = vcmp.ge.f32.partialorder %v435, 0.0
      %vm524 = vcmp.ge.f32.partialorder %v440, 0.0
      %vm525 = vcmp.ge.f32.partialorder %v443, 0.0
      %vm526 = vcmp.ge.f32.partialorder %v448, 0.0
      %vm527 = vcmp.ge.f32.partialorder %v451, 0.0
      %vm528 = vcmp.ge.f32.partialorder %v456, 0.0
      %vm529 = vcmp.ge.f32.partialorder %v459, 0.0
      %vm530 = vcmp.ge.f32.partialorder %v464, 0.0
      %vm531 = vcmp.ge.f32.partialorder %v467, 0.0
      %vm532 = vcmp.ge.f32.partialorder %v472, 0.0
      %vm533 = vcmp.ge.f32.partialorder %v475, 0.0
      %vm534 = vcmp.ge.f32.partialorder %v480, 0.0
      %vm535 = vcmp.ge.f32.partialorder %v483, 0.0
      %vm536 = vcmp.ge.f32.partialorder %v488, 0.0
      %vm537 = vcmp.ge.f32.partialorder %v491, 0.0
      %vm538 = vcmp.ge.f32.partialorder %v496, 0.0
      %vm539 = vcmp.ge.f32.partialorder %v499, 0.0
      %vm540 = vcmp.ge.f32.partialorder %v504, 0.0
      %vm541 = vcmp.ge.f32.partialorder %v507, 0.0
      %v542 = vmul.f32 %v384, 0.01
      %v543 = vmul.f32 %v387, 0.01
      %v544 = vmul.f32 %v392, 0.01
      %v545 = vmul.f32 %v395, 0.01
      %v546 = vmul.f32 %v400, 0.01
      %v547 = vmul.f32 %v403, 0.01
      %v548 = vmul.f32 %v408, 0.01
      %v549 = vmul.f32 %v411, 0.01
      %v550 = vmul.f32 %v416, 0.01
      %v551 = vmul.f32 %v419, 0.01
      %v552 = vmul.f32 %v424, 0.01
      %v553 = vmul.f32 %v427, 0.01
      %v554 = vmul.f32 %v432, 0.01
      %v555 = vmul.f32 %v435, 0.01
      %v556 = vmul.f32 %v440, 0.01
      %v557 = vmul.f32 %v443, 0.01
      %v558 = vmul.f32 %v448, 0.01
      %v559 = vmul.f32 %v451, 0.01
      %v560 = vmul.f32 %v456, 0.01
      %v561 = vmul.f32 %v459, 0.01
      %v562 = vmul.f32 %v464, 0.01
      %v563 = vmul.f32 %v467, 0.01
      %v564 = vmul.f32 %v472, 0.01
      %v565 = vmul.f32 %v475, 0.01
      %v566 = vmul.f32 %v480, 0.01
      %v567 = vmul.f32 %v483, 0.01
      %v568 = vmul.f32 %v488, 0.01
      %v569 = vmul.f32 %v491, 0.01
      %v570 = vmul.f32 %v496, 0.01
      %v571 = vmul.f32 %v499, 0.01
      %v572 = vmul.f32 %v504, 0.01
      %v573 = vmul.f32 %v507, 0.01
      %v574 = vsel %vm510, %v384, %v542
      %v575 = vsel %vm511, %v387, %v543
      %v576 = vsel %vm512, %v392, %v544
      %v577 = vsel %vm513, %v395, %v545
      %v578 = vsel %vm514, %v400, %v546
      %v579 = vsel %vm515, %v403, %v547
      %v580 = vsel %vm516, %v408, %v548
      %v581 = vsel %vm517, %v411, %v549
      %v582 = vsel %vm518, %v416, %v550
      %v583 = vsel %vm519, %v419, %v551
      %v584 = vsel %vm520, %v424, %v552
      %v585 = vsel %vm521, %v427, %v553
      %v586 = vsel %vm522, %v432, %v554
      %v587 = vsel %vm523, %v435, %v555
      %v588 = vsel %vm524, %v440, %v556
      %v589 = vsel %vm525, %v443, %v557
      %v590 = vsel %vm526, %v448, %v558
      %v591 = vsel %vm527, %v451, %v559
      %v592 = vsel %vm528, %v456, %v560
      %v593 = vsel %vm529, %v459, %v561
      %v594 = vsel %vm530, %v464, %v562
      %v595 = vsel %vm531, %v467, %v563
      %v596 = vsel %vm532, %v472, %v564
      %v597 = vsel %vm533, %v475, %v565
      %v598 = vsel %vm534, %v480, %v566
      %v599 = vsel %vm535, %v483, %v567
      %v600 = vsel %vm536, %v488, %v568
      %v601 = vsel %vm537, %v491, %v569
      %v602 = vsel %vm538, %v496, %v570
      %v603 = vsel %vm539, %v499, %v571
      %v604 = vsel %vm540, %v504, %v572
      %v605 = vsel %vm541, %v507, %v573
      %v606 = vpack.c.bf16 %v575, %v574
      %v607 = vpack.c.bf16 %v577, %v576
      %v608 = vpack.c.bf16 %v579, %v578
      %v609 = vpack.c.bf16 %v581, %v580
      %v610 = vpack.c.bf16 %v583, %v582
      %v611 = vpack.c.bf16 %v585, %v584
      %v612 = vpack.c.bf16 %v587, %v586
      %v613 = vpack.c.bf16 %v589, %v588
      %v614 = vpack.c.bf16 %v591, %v590
      %v615 = vpack.c.bf16 %v593, %v592
      %v616 = vpack.c.bf16 %v595, %v594
      %v617 = vpack.c.bf16 %v597, %v596
      %v618 = vpack.c.bf16 %v599, %v598
      %v619 = vpack.c.bf16 %v601, %v600
      %v620 = vpack.c.bf16 %v603, %v602
      %v621 = vpack.c.bf16 %v605, %v604
      %v622 = vld [vmem:[%s3] sm:$0xf]
      %v623 = vld [vmem:[%s3 + $0x4] sm:$0xf]
      %v624 = vld [vmem:[%s3 + $0x8] sm:$0xf]
      %v625 = vld [vmem:[%s3 + $0xc] sm:$0xf]
      %v626 = vld [vmem:[%s3 + $0x10] sm:$0xf]
      %v627 = vld [vmem:[%s3 + $0x14] sm:$0xf]
      %v628 = vld [vmem:[%s3 + $0x18] sm:$0xf]
      %v629 = vld [vmem:[%s3 + $0x1c] sm:$0xf]
      %v630 = vld [vmem:[%s3 + $0x20] sm:$0xf]
      %v631 = vld [vmem:[%s3 + $0x24] sm:$0xf]
      %v632 = vld [vmem:[%s3 + $0x28] sm:$0xf]
      %v633 = vld [vmem:[%s3 + $0x2c] sm:$0xf]
      %v634 = vld [vmem:[%s3 + $0x30] sm:$0xf]
      %v635 = vld [vmem:[%s3 + $0x34] sm:$0xf]
      %v636 = vld [vmem:[%s3 + $0x38] sm:$0xf]
      %v637 = vld [vmem:[%s3 + $0x3c] sm:$0xf]
      %s638 = sld [smem:[#allocation2]]
      %v639 = vstv %s638
      %v656 = vunpack.c.l.b16 %v622
      %v657 = vunpack.c.l.b16 %v623
      %v658 = vunpack.c.l.b16 %v624
      %v659 = vunpack.c.l.b16 %v625
      %v660 = vunpack.c.l.b16 %v626
      %v661 = vunpack.c.l.b16 %v627
      %v662 = vunpack.c.l.b16 %v628
      %v663 = vunpack.c.l.b16 %v629
      %v664 = vunpack.c.l.b16 %v630
      %v665 = vunpack.c.l.b16 %v631
      %v666 = vunpack.c.l.b16 %v632
      %v667 = vunpack.c.l.b16 %v633
      %v668 = vunpack.c.l.b16 %v634
      %v669 = vunpack.c.l.b16 %v635
      %v670 = vunpack.c.l.b16 %v636
      %v671 = vunpack.c.l.b16 %v637
      %v672 = vpack.c.b16 %v657, %v656
      %v673 = vpack.c.b16 %v659, %v658
      %v674 = vpack.c.b16 %v661, %v660
      %v675 = vpack.c.b16 %v663, %v662
      %v676 = vpack.c.b16 %v665, %v664
      %v677 = vpack.c.b16 %v667, %v666
      %v678 = vpack.c.b16 %v669, %v668
      %v679 = vpack.c.b16 %v671, %v670
      %688 = vmatprep.subr.bf16.mxu0 0
      %689 = vmatpush1.bf16.msra.mxu0 %v679
      %690 = vmatprep.subr.bf16.mxu0 0
      %691 = vmatpush1.bf16.msra.mxu0 %v678
      %692 = vmatprep.subr.bf16.mxu0 0
      %693 = vmatpush1.bf16.msra.mxu0 %v677
      %694 = vmatprep.subr.bf16.mxu0 0
      %695 = vmatpush1.bf16.msra.mxu0 %v676
      %696 = vmatprep.subr.bf16.mxu0 0
      %697 = vmatpush1.bf16.msra.mxu0 %v675
      %698 = vmatprep.subr.bf16.mxu0 0
      %699 = vmatpush1.bf16.msra.mxu0 %v674
      %700 = vmatprep.subr.bf16.mxu0 0
      %701 = vmatpush1.bf16.msra.mxu0 %v673
      %702 = vmatprep.subr.bf16.mxu0 0
      %703 = vmatpush1.bf16.msra.mxu0 %v672
      %704 = vmatprep.subr.bf16.mxu0 0
      %705 = vmatpush2.bf16.msra.mxu0 0
      %706 = vmatprep.subr.bf16.mxu0 0
      %707 = vmatpush2.bf16.msra.mxu0 0
      %708 = vmatprep.subr.bf16.mxu0 0
      %709 = vmatpush2.bf16.msra.mxu0 0
      %710 = vmatprep.subr.bf16.mxu0 0
      %711 = vmatpush2.bf16.msra.mxu0 0
      %712 = vmatprep.subr.bf16.mxu0 0
      %713 = vmatpush2.bf16.msra.mxu0 0
      %714 = vmatprep.subr.bf16.mxu0 0
      %715 = vmatpush2.bf16.msra.mxu0 0
      %716 = vmatprep.subr.bf16.mxu0 0
      %717 = vmatpush2.bf16.msra.mxu0 0
      %718 = vmatprep.subr.bf16.mxu0 0
      %719 = vmatpush2.bf16.msra.mxu0 0
      %720 = vmatprep.mubr.bf16.mxu0 0
      %721 = vmatmul.mubr.bf16.gmra.mxu0 %v606
      %v722 = vpop.f32.mrf.mxu0
      %v723 = vadd.f32 %v639, %v722
      %v724 = vpop.f32.mrf.mxu0
      %v725 = vpop.f32.mrf.mxu0
      %v726 = vadd.f32 %v639, %v725
      %v727 = vpop.f32.mrf.mxu0
      %728 = vmatprep.mubr.bf16.mxu0 0
      %729 = vmatmul.mubr.bf16.gmra.mxu0 %v607
      %v730 = vpop.f32.mrf.mxu0
      %v731 = vadd.f32 %v639, %v730
      %v732 = vpop.f32.mrf.mxu0
      %v733 = vpop.f32.mrf.mxu0
      %v734 = vadd.f32 %v639, %v733
      %v735 = vpop.f32.mrf.mxu0
      %736 = vmatprep.mubr.bf16.mxu0 0
      %737 = vmatmul.mubr.bf16.gmra.mxu0 %v608
      %v738 = vpop.f32.mrf.mxu0
      %v739 = vadd.f32 %v639, %v738
      %v740 = vpop.f32.mrf.mxu0
      %v741 = vpop.f32.mrf.mxu0
      %v742 = vadd.f32 %v639, %v741
      %v743 = vpop.f32.mrf.mxu0
      %744 = vmatprep.mubr.bf16.mxu0 0
      %745 = vmatmul.mubr.bf16.gmra.mxu0 %v609
      %v746 = vpop.f32.mrf.mxu0
      %v747 = vadd.f32 %v639, %v746
      %v748 = vpop.f32.mrf.mxu0
      %v749 = vpop.f32.mrf.mxu0
      %v750 = vadd.f32 %v639, %v749
      %v751 = vpop.f32.mrf.mxu0
      %752 = vmatprep.mubr.bf16.mxu0 0
      %753 = vmatmul.mubr.bf16.gmra.mxu0 %v610
      %v754 = vpop.f32.mrf.mxu0
      %v755 = vadd.f32 %v639, %v754
      %v756 = vpop.f32.mrf.mxu0
      %v757 = vpop.f32.mrf.mxu0
      %v758 = vadd.f32 %v639, %v757
      %v759 = vpop.f32.mrf.mxu0
      %760 = vmatprep.mubr.bf16.mxu0 0
      %761 = vmatmul.mubr.bf16.gmra.mxu0 %v611
      %v762 = vpop.f32.mrf.mxu0
      %v763 = vadd.f32 %v639, %v762
      %v764 = vpop.f32.mrf.mxu0
      %v765 = vpop.f32.mrf.mxu0
      %v766 = vadd.f32 %v639, %v765
      %v767 = vpop.f32.mrf.mxu0
      %768 = vmatprep.mubr.bf16.mxu0 0
      %769 = vmatmul.mubr.bf16.gmra.mxu0 %v612
      %v770 = vpop.f32.mrf.mxu0
      %v771 = vadd.f32 %v639, %v770
      %v772 = vpop.f32.mrf.mxu0
      %v773 = vpop.f32.mrf.mxu0
      %v774 = vadd.f32 %v639, %v773
      %v775 = vpop.f32.mrf.mxu0
      %776 = vmatprep.mubr.bf16.mxu0 0
      %777 = vmatmul.mubr.bf16.gmra.mxu0 %v613
      %v778 = vpop.f32.mrf.mxu0
      %v779 = vadd.f32 %v639, %v778
      %v780 = vpop.f32.mrf.mxu0
      %v781 = vpop.f32.mrf.mxu0
      %v782 = vadd.f32 %v639, %v781
      %v783 = vpop.f32.mrf.mxu0
      %784 = vmatprep.mubr.bf16.mxu0 0
      %785 = vmatmul.mubr.bf16.gmra.mxu0 %v614
      %v786 = vpop.f32.mrf.mxu0
      %v787 = vadd.f32 %v639, %v786
      %v788 = vpop.f32.mrf.mxu0
      %v789 = vpop.f32.mrf.mxu0
      %v790 = vadd.f32 %v639, %v789
      %v791 = vpop.f32.mrf.mxu0
      %792 = vmatprep.mubr.bf16.mxu0 0
      %793 = vmatmul.mubr.bf16.gmra.mxu0 %v615
      %v794 = vpop.f32.mrf.mxu0
      %v795 = vadd.f32 %v639, %v794
      %v796 = vpop.f32.mrf.mxu0
      %v797 = vpop.f32.mrf.mxu0
      %v798 = vadd.f32 %v639, %v797
      %v799 = vpop.f32.mrf.mxu0
      %800 = vmatprep.mubr.bf16.mxu0 0
      %801 = vmatmul.mubr.bf16.gmra.mxu0 %v616
      %v802 = vpop.f32.mrf.mxu0
      %v803 = vadd.f32 %v639, %v802
      %v804 = vpop.f32.mrf.mxu0
      %v805 = vpop.f32.mrf.mxu0
      %v806 = vadd.f32 %v639, %v805
      %v807 = vpop.f32.mrf.mxu0
      %808 = vmatprep.mubr.bf16.mxu0 0
      %809 = vmatmul.mubr.bf16.gmra.mxu0 %v617
      %v810 = vpop.f32.mrf.mxu0
      %v811 = vadd.f32 %v639, %v810
      %v812 = vpop.f32.mrf.mxu0
      %v813 = vpop.f32.mrf.mxu0
      %v814 = vadd.f32 %v639, %v813
      %v815 = vpop.f32.mrf.mxu0
      %816 = vmatprep.mubr.bf16.mxu0 0
      %817 = vmatmul.mubr.bf16.gmra.mxu0 %v618
      %v818 = vpop.f32.mrf.mxu0
      %v819 = vadd.f32 %v639, %v818
      %v820 = vpop.f32.mrf.mxu0
      %v821 = vpop.f32.mrf.mxu0
      %v822 = vadd.f32 %v639, %v821
      %v823 = vpop.f32.mrf.mxu0
      %824 = vmatprep.mubr.bf16.mxu0 0
      %825 = vmatmul.mubr.bf16.gmra.mxu0 %v619
      %v826 = vpop.f32.mrf.mxu0
      %v827 = vadd.f32 %v639, %v826
      %v828 = vpop.f32.mrf.mxu0
      %v829 = vpop.f32.mrf.mxu0
      %v830 = vadd.f32 %v639, %v829
      %v831 = vpop.f32.mrf.mxu0
      %832 = vmatprep.mubr.bf16.mxu0 0
      %833 = vmatmul.mubr.bf16.gmra.mxu0 %v620
      %v834 = vpop.f32.mrf.mxu0
      %v835 = vadd.f32 %v639, %v834
      %v836 = vpop.f32.mrf.mxu0
      %v837 = vpop.f32.mrf.mxu0
      %v838 = vadd.f32 %v639, %v837
      %v839 = vpop.f32.mrf.mxu0
      %840 = vmatprep.mubr.bf16.mxu0 0
      %841 = vmatmul.mubr.bf16.gmra.mxu0 %v621
      %v842 = vpop.f32.mrf.mxu0
      %v843 = vadd.f32 %v639, %v842
      %v844 = vpop.f32.mrf.mxu0
      %v845 = vpop.f32.mrf.mxu0
      %v846 = vadd.f32 %v639, %v845
      %v847 = vpop.f32.mrf.mxu0
      %848 = vdwg.mxu0
      %v849 = vsub.f32 0.0, %v723
      %v850 = vsub.f32 0.0, %v726
      %v851 = vsub.f32 0.0, %v731
      %v852 = vsub.f32 0.0, %v734
      %v853 = vsub.f32 0.0, %v739
      %v854 = vsub.f32 0.0, %v742
      %v855 = vsub.f32 0.0, %v747
      %v856 = vsub.f32 0.0, %v750
      %v857 = vsub.f32 0.0, %v755
      %v858 = vsub.f32 0.0, %v758
      %v859 = vsub.f32 0.0, %v763
      %v860 = vsub.f32 0.0, %v766
      %v861 = vsub.f32 0.0, %v771
      %v862 = vsub.f32 0.0, %v774
      %v863 = vsub.f32 0.0, %v779
      %v864 = vsub.f32 0.0, %v782
      %v865 = vsub.f32 0.0, %v787
      %v866 = vsub.f32 0.0, %v790
      %v867 = vsub.f32 0.0, %v795
      %v868 = vsub.f32 0.0, %v798
      %v869 = vsub.f32 0.0, %v803
      %v870 = vsub.f32 0.0, %v806
      %v871 = vsub.f32 0.0, %v811
      %v872 = vsub.f32 0.0, %v814
      %v873 = vsub.f32 0.0, %v819
      %v874 = vsub.f32 0.0, %v822
      %v875 = vsub.f32 0.0, %v827
      %v876 = vsub.f32 0.0, %v830
      %v877 = vsub.f32 0.0, %v835
      %v878 = vsub.f32 0.0, %v838
      %v879 = vsub.f32 0.0, %v843
      %v880 = vsub.f32 0.0, %v846
      %v881 = vmul.f32 %v849, 1.442695
      %v882 = vpow.pop %v881
      %v883 = vmul.f32 %v850, 1.442695
      %v884 = vpow.pop %v883
      %v885 = vmul.f32 %v851, 1.442695
      %v886 = vpow.pop %v885
      %v887 = vmul.f32 %v852, 1.442695
      %v888 = vpow.pop %v887
      %v889 = vmul.f32 %v853, 1.442695
      %v890 = vpow.pop %v889
      %v891 = vmul.f32 %v854, 1.442695
      %v892 = vpow.pop %v891
      %v893 = vmul.f32 %v855, 1.442695
      %v894 = vpow.pop %v893
      %v895 = vmul.f32 %v856, 1.442695
      %v896 = vpow.pop %v895
      %v897 = vmul.f32 %v857, 1.442695
      %v898 = vpow.pop %v897
      %v899 = vmul.f32 %v858, 1.442695
      %v900 = vpow.pop %v899
      %v901 = vmul.f32 %v859, 1.442695
      %v902 = vpow.pop %v901
      %v903 = vmul.f32 %v860, 1.442695
      %v904 = vpow.pop %v903
      %v905 = vmul.f32 %v861, 1.442695
      %v906 = vpow.pop %v905
      %v907 = vmul.f32 %v862, 1.442695
      %v908 = vpow.pop %v907
      %v909 = vmul.f32 %v863, 1.442695
      %v910 = vpow.pop %v909
      %v911 = vmul.f32 %v864, 1.442695
      %v912 = vpow.pop %v911
      %v913 = vmul.f32 %v865, 1.442695
      %v914 = vpow.pop %v913
      %v915 = vmul.f32 %v866, 1.442695
      %v916 = vpow.pop %v915
      %v917 = vmul.f32 %v867, 1.442695
      %v918 = vpow.pop %v917
      %v919 = vmul.f32 %v868, 1.442695
      %v920 = vpow.pop %v919
      %v921 = vmul.f32 %v869, 1.442695
      %v922 = vpow.pop %v921
      %v923 = vmul.f32 %v870, 1.442695
      %v924 = vpow.pop %v923
      %v925 = vmul.f32 %v871, 1.442695
      %v926 = vpow.pop %v925
      %v927 = vmul.f32 %v872, 1.442695
      %v928 = vpow.pop %v927
      %v929 = vmul.f32 %v873, 1.442695
      %v930 = vpow.pop %v929
      %v931 = vmul.f32 %v874, 1.442695
      %v932 = vpow.pop %v931
      %v933 = vmul.f32 %v875, 1.442695
      %v934 = vpow.pop %v933
      %v935 = vmul.f32 %v876, 1.442695
      %v936 = vpow.pop %v935
      %v937 = vmul.f32 %v877, 1.442695
      %v938 = vpow.pop %v937
      %v939 = vmul.f32 %v878, 1.442695
      %v940 = vpow.pop %v939
      %v941 = vmul.f32 %v879, 1.442695
      %v942 = vpow.pop %v941
      %v943 = vmul.f32 %v880, 1.442695
      %v944 = vpow.pop %v943
      %v945 = vadd.f32 %v882, 1.0
      %v946 = vadd.f32 %v884, 1.0
      %v947 = vadd.f32 %v886, 1.0
      %v948 = vadd.f32 %v888, 1.0
      %v949 = vadd.f32 %v890, 1.0
      %v950 = vadd.f32 %v892, 1.0
      %v951 = vadd.f32 %v894, 1.0
      %v952 = vadd.f32 %v896, 1.0
      %v953 = vadd.f32 %v898, 1.0
      %v954 = vadd.f32 %v900, 1.0
      %v955 = vadd.f32 %v902, 1.0
      %v956 = vadd.f32 %v904, 1.0
      %v957 = vadd.f32 %v906, 1.0
      %v958 = vadd.f32 %v908, 1.0
      %v959 = vadd.f32 %v910, 1.0
      %v960 = vadd.f32 %v912, 1.0
      %v961 = vadd.f32 %v914, 1.0
      %v962 = vadd.f32 %v916, 1.0
      %v963 = vadd.f32 %v918, 1.0
      %v964 = vadd.f32 %v920, 1.0
      %v965 = vadd.f32 %v922, 1.0
      %v966 = vadd.f32 %v924, 1.0
      %v967 = vadd.f32 %v926, 1.0
      %v968 = vadd.f32 %v928, 1.0
      %v969 = vadd.f32 %v930, 1.0
      %v970 = vadd.f32 %v932, 1.0
      %v971 = vadd.f32 %v934, 1.0
      %v972 = vadd.f32 %v936, 1.0
      %v973 = vadd.f32 %v938, 1.0
      %v974 = vadd.f32 %v940, 1.0
      %v975 = vadd.f32 %v942, 1.0
      %v976 = vadd.f32 %v944, 1.0
      %v977 = vrcp.pop %v945
      %v978 = vrcp.pop %v946
      %v979 = vrcp.pop %v947
      %v980 = vrcp.pop %v948
      %v981 = vrcp.pop %v949
      %v982 = vrcp.pop %v950
      %v983 = vrcp.pop %v951
      %v984 = vrcp.pop %v952
      %v985 = vrcp.pop %v953
      %v986 = vrcp.pop %v954
      %v987 = vrcp.pop %v955
      %v988 = vrcp.pop %v956
      %v989 = vrcp.pop %v957
      %v990 = vrcp.pop %v958
      %v991 = vrcp.pop %v959
      %v992 = vrcp.pop %v960
      %v993 = vrcp.pop %v961
      %v994 = vrcp.pop %v962
      %v995 = vrcp.pop %v963
      %v996 = vrcp.pop %v964
      %v997 = vrcp.pop %v965
      %v998 = vrcp.pop %v966
      %v999 = vrcp.pop %v967
      %v1000 = vrcp.pop %v968
      %v1001 = vrcp.pop %v969
      %v1002 = vrcp.pop %v970
      %v1003 = vrcp.pop %v971
      %v1004 = vrcp.pop %v972
      %v1005 = vrcp.pop %v973
      %v1006 = vrcp.pop %v974
      %v1007 = vrcp.pop %v975
      %v1008 = vrcp.pop %v976
      %vm1009 = vcmask 31744
      %1010 = vst.msk [vmem:[%s227] sm:$0xff] %vm1009, %v977
      %1011 = vst.msk [vmem:[%s227 + $0x8] sm:$0xff] %vm1009, %v978
      %1012 = vst.msk [vmem:[%s227 + $0x10] sm:$0xff] %vm1009, %v979
      %1013 = vst.msk [vmem:[%s227 + $0x18] sm:$0xff] %vm1009, %v980
      %1014 = vst.msk [vmem:[%s227 + $0x20] sm:$0xff] %vm1009, %v981
      %1015 = vst.msk [vmem:[%s227 + $0x28] sm:$0xff] %vm1009, %v982
      %1016 = vst.msk [vmem:[%s227 + $0x30] sm:$0xff] %vm1009, %v983
      %1017 = vst.msk [vmem:[%s227 + $0x38] sm:$0xff] %vm1009, %v984
      %1018 = vst.msk [vmem:[%s227 + $0x40] sm:$0xff] %vm1009, %v985
      %1019 = vst.msk [vmem:[%s227 + $0x48] sm:$0xff] %vm1009, %v986
      %1020 = vst.msk [vmem:[%s227 + $0x50] sm:$0xff] %vm1009, %v987
      %1021 = vst.msk [vmem:[%s227 + $0x58] sm:$0xff] %vm1009, %v988
      %1022 = vst.msk [vmem:[%s227 + $0x60] sm:$0xff] %vm1009, %v989
      %1023 = vst.msk [vmem:[%s227 + $0x68] sm:$0xff] %vm1009, %v990
      %1024 = vst.msk [vmem:[%s227 + $0x70] sm:$0xff] %vm1009, %v991
      %1025 = vst.msk [vmem:[%s227 + $0x78] sm:$0xff] %vm1009, %v992
      %1026 = vst.msk [vmem:[%s227 + $0x80] sm:$0xff] %vm1009, %v993
      %1027 = vst.msk [vmem:[%s227 + $0x88] sm:$0xff] %vm1009, %v994
      %1028 = vst.msk [vmem:[%s227 + $0x90] sm:$0xff] %vm1009, %v995
      %1029 = vst.msk [vmem:[%s227 + $0x98] sm:$0xff] %vm1009, %v996
      %1030 = vst.msk [vmem:[%s227 + $0xa0] sm:$0xff] %vm1009, %v997
      %1031 = vst.msk [vmem:[%s227 + $0xa8] sm:$0xff] %vm1009, %v998
      %1032 = vst.msk [vmem:[%s227 + $0xb0] sm:$0xff] %vm1009, %v999
      %1033 = vst.msk [vmem:[%s227 + $0xb8] sm:$0xff] %vm1009, %v1000
      %1034 = vst.msk [vmem:[%s227 + $0xc0] sm:$0xff] %vm1009, %v1001
      %1035 = vst.msk [vmem:[%s227 + $0xc8] sm:$0xff] %vm1009, %v1002
      %1036 = vst.msk [vmem:[%s227 + $0xd0] sm:$0xff] %vm1009, %v1003
      %1037 = vst.msk [vmem:[%s227 + $0xd8] sm:$0xff] %vm1009, %v1004
      %1038 = vst.msk [vmem:[%s227 + $0xe0] sm:$0xff] %vm1009, %v1005
      %1039 = vst.msk [vmem:[%s227 + $0xe8] sm:$0xff] %vm1009, %v1006
      %1040 = vst.msk [vmem:[%s227 + $0xf0] sm:$0xff] %vm1009, %v1007
      %1041 = vst.msk [vmem:[%s227 + $0xf8] sm:$0xff] %vm1009, %v1008
      %s1042 = smul.u32 32, %s17
      %p1043 = scmp.lt.s32.totalorder %s1042, 63
      %s1044 = scalar_select %p1043, %s1042, 63
      %s1045 = smul.addr %s1044, 8
      %s1046 = scalar_lea.vmem %s5, %s1045
      // Predicated region
      $region41: #{net_forward.1} parent=39 // pred_check
        %p1047 = pneg %p145
      $region42: #{net_forward.1} parent=39 // pred_check_branch
        %1049 = sbr.rel (%p1047) target = $region44
      $region43: #{net_forward.1} parent=39 // pred_region
        %s1050 = smul.u32 32, %s17
      $region44: #{net_forward.1} parent=39 // pred_fallthru
        _
    $region40: #{net_forward.1} parent=5 // pred_fallthru
      _
    %p1051 = scmp.le.s32.totalorder 2, %s12
    // Predicated region
    $region45: #{net_forward.1} parent=5 // pred_check
      %p1052 = pneg %p1051
    $region46: #{net_forward.1} parent=5 // pred_check_branch
      %1054 = sbr.rel (%p1052) target = $region48
    $region47: #{net_forward.1} parent=5 // pred_region
      %s1055 = ssub.s32 %s12, 2
      // Predicated region
      $region49: #{net_forward.1} parent=47 // pred_check
        %p1056 = pneg %p151
      $region50: #{net_forward.1} parent=47 // pred_check_branch
        %1058 = sbr.rel (%p1056) target = $region52
      $region51: #{net_forward.1} parent=47 // pred_region
        %s1059 = smul.u32 32, %s18
        %p1060 = scmp.lt.s32.totalorder %s1059, 63
        %s1061 = scalar_select %p1060, %s1059, 63
        %s1062 = smul.addr %s1061, 8
        %s1063 = scalar_lea.vmem %s5, %s1062
      $region52: #{net_forward.1} parent=47 // pred_fallthru
        _
    $region48: #{net_forward.1} parent=5 // pred_fallthru
      _
  $region6: #{net_forward.1} parent=0 // loop_footer
    %s16 = sadd.s32 1, %s12
  $region7: #{net_forward.1} parent=0 // loop_footer_branch
    %11 = sbr.rel target = $region3
  $region8: #{net_forward.1} parent=0 // loop_exit
    _

</llo_original>
